<compile_context>
chip_gen: v7x
topology: tpu7x:2x2x1
jax: 0.10.0
libtpu: 0.0.40
codegen_flags: <defaults>
</compile_context>

<pallas_src>
import functools

import jax
import jax.numpy as jnp
from jax import lax
from jax.experimental import pallas as pl
from jax.experimental.pallas import tpu as pltpu

EPS = 1e-5
LANES = 128


def _round_up(x, m):
    return (x + m - 1) // m * m


def _padded_bytes(shape, itemsize):
    """Rough VMEM footprint of one block (lane/sublane padded)."""
    shape = tuple(shape)
    if len(shape) < 2:
        shape = (1,) * (2 - len(shape)) + shape
    lead = 1
    for d in shape[:-2]:
        lead *= d
    return lead * _round_up(shape[-2], 8) * _round_up(shape[-1], LANES) * itemsize


def _vmem_limit(blocks):
    """blocks: iterable of (block_shape, dtype). Double-buffered + headroom."""
    need = sum(_padded_bytes(s, jnp.dtype(d).itemsize) for s, d in blocks)
    need = 2 * need + (4 << 20)
    return int(max(32 << 20, min(need, 100 << 20)))


def _pick_row_tile(ohw, max_rows=2048):
    """Largest multiple-of-128 divisor of ohw that is <= max_rows, else ohw."""
    if ohw <= max_rows:
        return ohw
    start = max_rows - max_rows % LANES
    for t in range(start, 0, -LANES):
        if ohw % t == 0:
            return t
    return ohw  # fall back to whole-image block


# --------------------------------------------------------------------------
# Kernel 1: conv (3 big MXU matmuls, one per KH tap) + per-image BN partials.
# --------------------------------------------------------------------------
def _conv_stats_kernel(x_ref, w_ref, conv_ref, s1_ref, ssq_ref):
    # x_ref:    [1, KH, OH*OW, KW*Cin] bf16  one image, taps pre-gathered
    # w_ref:    [KH, KW*Cin, Cpad]     bf16  per-kh weight slabs (Cout padded)
    # conv_ref: [1, OH*OW, Cpad]       bf16  conv output (lane-dense)
    # s1_ref:   [1, 1, Cpad]           f32   per-image sum
    # ssq_ref:  [1, 1, Cpad]           f32   per-image centered sum of squares
    kh_taps = w_ref.shape[0]
    ohw = conv_ref.shape[1]

    # M = OH*OW rows per matmul (not OW): fewer, fatter MXU pushes, one store.
    acc = jnp.dot(x_ref[0, 0], w_ref[0], preferred_element_type=jnp.float32)
    for t in range(1, kh_taps):
        acc += jnp.dot(x_ref[0, t], w_ref[t], preferred_element_type=jnp.float32)

    # BN partial stats from the resident f32 accumulator.  Centering by the
    # tile mean (not raw sum-of-squares) avoids E[x^2]-E[x]^2 cancellation;
    # tiles are combined in the wrapper with Chan's parallel-variance formula.
    s1 = jnp.sum(acc, axis=0, keepdims=True)                 # [1, Cpad]
    centered = acc - s1 * (1.0 / ohw)
    s1_ref[0] = s1
    ssq_ref[0] = jnp.sum(centered * centered, axis=0, keepdims=True)

    conv_ref[0] = acc.astype(conv_ref.dtype)                 # bf16 intermediate


# --------------------------------------------------------------------------
# Kernel 2: folded BN affine + ReLU + fused channel-slice & NHWC->NCHW.
# --------------------------------------------------------------------------
def _bn_relu_t_kernel(conv_ref, scale_ref, shift_ref, o_ref):
    # conv_ref: [1, RT, Cpad] bf16; scale/shift: [1, 1, Cpad] f32
    # o_ref:    [1, Cout, RT] f32  (channel slice + transpose fused here)
    y = conv_ref[0].astype(jnp.float32) * scale_ref[0] + shift_ref[0]
    y = jnp.maximum(y, 0.0)                                  # [RT, Cpad]
    yt = jnp.transpose(y)                                    # XLU slot is idle here
    o_ref[0] = yt[:o_ref.shape[1], :]                        # drop channel padding


def conv_block(x_nchw, weight_oihw, gamma, beta, *, stride=2, padding=1):
    """x_nchw: [N, Cin, H, W]; weight: [Cout, Cin, KH, KW]; training-mode BN."""
    N, Cin, H, W = x_nchw.shape
    Cout, _, KH, KW = weight_oihw.shape
    OH = (H + 2 * padding - KH) // stride + 1
    OW = (W + 2 * padding - KW) // stride + 1
    KWC = KW * Cin
    OHW = OH * OW
    M = N * OHW
    Cpad = _round_up(Cout, LANES)

    # ---- glue: pad + gather the KHxKW stride-`stride` taps (bf16).
    # Layout [N, KH, OH*OW, KW*Cin]: each KH tap is a contiguous matmul LHS in
    # the kernel.  HBM inflation ~ (KH*OH/HP)*(KW*OW/WP) (~2.3x for k=3 s=2),
    # not the full 9x im2col.
    x_nhwc = jnp.transpose(x_nchw, (0, 2, 3, 1))
    xp = jnp.pad(x_nhwc, ((0, 0), (padding, padding), (padding, padding), (0, 0)))
    taps = []
    for kh in range(KH):
        rows = xp[:, kh:kh + stride * OH:stride]                       # [N,OH,WP,Cin]
        cols = [rows[:, :, kw:kw + stride * OW:stride, :] for kw in range(KW)]
        tap = jnp.stack(cols, axis=3)                                  # [N,OH,OW,KW,Cin]
        taps.append(tap.reshape(N, OHW, KWC))
    xh = jnp.stack(taps, axis=1).astype(jnp.bfloat16)                  # [N,KH,OHW,KWC]

    # weight [Cout, Cin, KH, KW] -> [KH, KW*Cin, Cpad] (zero-padded), bf16.
    w_k = jnp.transpose(weight_oihw, (2, 3, 1, 0)).reshape(KH, KWC, Cout)
    w_k = jnp.pad(w_k, ((0, 0), (0, 0), (0, Cpad - Cout))).astype(jnp.bfloat16)

    # ---- kernel 1: conv + per-image BN partial stats (grid parallel over N).
    k1_blocks = [((1, KH, OHW, KWC), jnp.bfloat16),
                 ((KH, KWC, Cpad), jnp.bfloat16),
                 ((1, OHW, Cpad), jnp.bfloat16),
                 ((1, 1, Cpad), jnp.float32),
                 ((1, 1, Cpad), jnp.float32)]
    conv_flops = 2 * M * KH * KWC * Cpad + 4 * M * Cpad
    conv_bytes = (N * KH * OHW * KWC * 2 + KH * KWC * Cpad * 2
                  + M * Cpad * 2 + 2 * N * Cpad * 4)
    conv_out, s1, ssq = pl.pallas_call(
        _conv_stats_kernel,
        out_shape=(
            jax.ShapeDtypeStruct((N, OHW, Cpad), jnp.bfloat16),
            jax.ShapeDtypeStruct((N, 1, Cpad), jnp.float32),
            jax.ShapeDtypeStruct((N, 1, Cpad), jnp.float32),
        ),
        grid=(N,),
        in_specs=[
            pl.BlockSpec((1, KH, OHW, KWC), lambda n: (n, 0, 0, 0)),
            pl.BlockSpec((KH, KWC, Cpad), lambda n: (0, 0, 0)),
        ],
        out_specs=(
            pl.BlockSpec((1, OHW, Cpad), lambda n: (n, 0, 0)),
            pl.BlockSpec((1, 1, Cpad), lambda n: (n, 0, 0)),
            pl.BlockSpec((1, 1, Cpad), lambda n: (n, 0, 0)),
        ),
        compiler_params=pltpu.CompilerParams(
            dimension_semantics=("parallel",),
            vmem_limit_bytes=_vmem_limit(k1_blocks)),
        cost_estimate=pl.CostEstimate(
            flops=conv_flops, transcendentals=0, bytes_accessed=conv_bytes),
    )(xh, w_k)

    # ---- tiny glue (O(N*Cpad)): combine per-image stats (Chan), fold BN affine.
    m_tile = float(OHW)
    total = float(M)
    s1_tot = jnp.sum(s1, axis=0)                          # [1, Cpad]
    mean = s1_tot / total
    tile_mean = s1 / m_tile                               # [N, 1, Cpad]
    ss_between = jnp.sum(m_tile * (tile_mean - mean) ** 2, axis=0)
    var = (jnp.sum(ssq, axis=0) + ss_between) / total     # biased (BN training)
    inv = lax.rsqrt(var + EPS)
    # NOTE: gamma/beta MUST be zero-padded (see precision-contract comment).
    gamma_pad = jnp.pad(gamma.astype(jnp.float32), (0, Cpad - Cout)).reshape(1, Cpad)
    beta_pad = jnp.pad(beta.astype(jnp.float32), (0, Cpad - Cout)).reshape(1, Cpad)
    scale2d = gamma_pad * inv
    shift2d = beta_pad - mean * scale2d
    scale = scale2d.reshape(1, 1, Cpad)
    shift = shift2d.reshape(1, 1, Cpad)

    # ---- kernel 2: normalize (folded scale/shift) + ReLU + slice + transpose.
    row_tile = _pick_row_tile(OHW)
    n_rt = OHW // row_tile
    k2_blocks = [((1, row_tile, Cpad), jnp.bfloat16),
                 ((1, 1, Cpad), jnp.float32),
                 ((1, 1, Cpad), jnp.float32),
                 ((1, Cout, row_tile), jnp.float32)]
    y = pl.pallas_call(
        _bn_relu_t_kernel,
        out_shape=jax.ShapeDtypeStruct((N, Cout, OHW), jnp.float32),
        grid=(N, n_rt),
        in_specs=[
            pl.BlockSpec((1, row_tile, Cpad), lambda n, r: (n, r, 0)),
            pl.BlockSpec((1, 1, Cpad), lambda n, r: (0, 0, 0)),
            pl.BlockSpec((1, 1, Cpad), lambda n, r: (0, 0, 0)),
        ],
        out_specs=pl.BlockSpec((1, Cout, row_tile), lambda n, r: (n, 0, r)),
        compiler_params=pltpu.CompilerParams(
            dimension_semantics=("parallel", "parallel"),
            vmem_limit_bytes=_vmem_limit(k2_blocks)),
        cost_estimate=pl.CostEstimate(
            flops=3 * M * Cpad, transcendentals=0,
            bytes_accessed=M * Cpad * 2 + N * Cout * OHW * 4 + 2 * Cpad * 4),
    )(conv_out, scale, shift)

    # Free reshape (no data movement): [N, Cout, OH*OW] -> NCHW.
    return y.reshape(N, Cout, OH, OW)


def conv_block_reference(x, w, gamma, beta, *, stride=2, padding=1,
                         bf16_conv_intermediate=False):
    y = lax.conv_general_dilated(
        x, w, (stride, stride), ((padding, padding), (padding, padding)),
        dimension_numbers=("NCHW", "OIHW", "NCHW"),
        precision=lax.Precision.HIGHEST)
    mean = y.mean(axis=(0, 2, 3), keepdims=True)
    var = y.var(axis=(0, 2, 3), keepdims=True)   # biased, matches training BN
    if bf16_conv_intermediate:
        # Mirror the kernel's precision contract: stats from f32, the
        # normalized tensor from a bf16-rounded conv intermediate.
        y = y.astype(jnp.bfloat16).astype(jnp.float32)
    yn = (y - mean) * lax.rsqrt(var + EPS)
    yn = yn * gamma.reshape(1, -1, 1, 1) + beta.reshape(1, -1, 1, 1)
    return jnp.maximum(yn, 0.0)


if __name__ == "__main__":
    key = jax.random.PRNGKey(0)
    k_x, k_w, k_g, k_b = jax.random.split(key, 4)

    N, Cin, H, W = 2, 4, 16, 16
    Cout, KH, KW = 8, 3, 3

    x = jax.random.normal(k_x, (N, Cin, H, W), dtype=jnp.float32)
    weight = jax.random.normal(k_w, (Cout, Cin, KH, KW), dtype=jnp.float32) * 0.1
    # PyTorch BN init is gamma=1, beta=0; perturb so the affine path is exercised.
    gamma = 1.0 + 0.1 * jax.random.normal(k_g, (Cout,), dtype=jnp.float32)
    beta = 0.1 * jax.random.normal(k_b, (Cout,), dtype=jnp.float32)

    conv_block_fn = jax.jit(conv_block)
    out = jax.block_until_ready(conv_block_fn(x, weight, gamma, beta))
    assert out.shape == (N, Cout, H // 2, W // 2), out.shape

    # Precision-contract check: reference on the same bf16-rounded conv
    # operands AND a bf16-rounded conv intermediate (kernel: bf16 MXU operands,
    # f32 accumulation/stats, bf16 conv intermediate, f32 BN/ReLU).  Tolerance
    # covers f32 accumulation-order differences and rare bf16 ulp flips.
    x_q = x.astype(jnp.bfloat16).astype(jnp.float32)
    w_q = weight.astype(jnp.bfloat16).astype(jnp.float32)
    ref_q = jax.block_until_ready(conv_block_reference(
        x_q, w_q, gamma, beta, bf16_conv_intermediate=True))
    assert jnp.allclose(out, ref_q, atol=2e-2, rtol=2e-2), \
        float(jnp.max(jnp.abs(out - ref_q)))

    # Loose sanity check vs. the full-f32 reference (bounds all bf16 rounding).
    ref = jax.block_until_ready(conv_block_reference(x, weight, gamma, beta))
    assert jnp.allclose(out, ref, atol=0.1, rtol=0.1), \
        float(jnp.max(jnp.abs(out - ref)))

    print("KERNEL_OK")
</pallas_src>

<mosaic_0001>
module attributes {stable_mosaic.version = 11 : i64} {
  func.func @_conv_stats_kernel(%arg0: i32, %arg1: memref<1x3x64x12xbf16, #tpu.memory_space<vmem>>, %arg2: memref<3x12x128xbf16, #tpu.memory_space<vmem>>, %arg3: memref<1x64x128xbf16, #tpu.memory_space<vmem>>, %arg4: memref<1x1x128xf32, #tpu.memory_space<vmem>>, %arg5: memref<1x1x128xf32, #tpu.memory_space<vmem>>) attributes {dimension_semantics = [#tpu.dimension_semantics<parallel>], iteration_bounds = array<i64: 2>, scalar_prefetch = 0 : i64, scratch_operands = 0 : i64, tpu.core_type = #tpu.core_type<tc>, window_params = [{transform_indices = @transform_0, window_bounds = array<i64: 1, 3, 64, 12>}, {pipeline_mode = #tpu.pipeline_mode<synchronous>, transform_indices = @transform_1, window_bounds = array<i64: 3, 12, 128>}, {transform_indices = @transform_2, window_bounds = array<i64: 1, 64, 128>}, {transform_indices = @transform_3, window_bounds = array<i64: 1, 1, 128>}, {transform_indices = @transform_4, window_bounds = array<i64: 1, 1, 128>}]} {
    %c0 = arith.constant 0 : index
    %c0_0 = arith.constant 0 : index
    %c0_1 = arith.constant 0 : index
    %c0_2 = arith.constant 0 : index
    %0 = vector.load %arg1[%c0, %c0_0, %c0_1, %c0_2] : memref<1x3x64x12xbf16, #tpu.memory_space<vmem>>, vector<1x1x64x12xbf16>
    %1 = vector.shape_cast %0 : vector<1x1x64x12xbf16> to vector<64x12xbf16>
    %c0_3 = arith.constant 0 : index
    %c0_4 = arith.constant 0 : index
    %c0_5 = arith.constant 0 : index
    %2 = vector.load %arg2[%c0_3, %c0_4, %c0_5] : memref<3x12x128xbf16, #tpu.memory_space<vmem>>, vector<1x12x128xbf16>
    %3 = vector.shape_cast %2 : vector<1x12x128xbf16> to vector<12x128xbf16>
    %cst = arith.constant dense<0.000000e+00> : vector<64x128xf32>
    %4 = tpu.matmul %1, %3, %cst {dimension_numbers = #tpu.dot_dimension_numbers<[1], [0], [0], [1], [0, 0, 1, 1], [], []>} : vector<64x12xbf16>, vector<12x128xbf16>, vector<64x128xf32> -> vector<64x128xf32>
    %c0_6 = arith.constant 0 : index
    %c1 = arith.constant 1 : index
    %c0_7 = arith.constant 0 : index
    %c0_8 = arith.constant 0 : index
    %5 = vector.load %arg1[%c0_6, %c1, %c0_7, %c0_8] : memref<1x3x64x12xbf16, #tpu.memory_space<vmem>>, vector<1x1x64x12xbf16>
    %6 = vector.shape_cast %5 : vector<1x1x64x12xbf16> to vector<64x12xbf16>
    %c1_9 = arith.constant 1 : index
    %c0_10 = arith.constant 0 : index
    %c0_11 = arith.constant 0 : index
    %7 = vector.load %arg2[%c1_9, %c0_10, %c0_11] : memref<3x12x128xbf16, #tpu.memory_space<vmem>>, vector<1x12x128xbf16>
    %8 = vector.shape_cast %7 : vector<1x12x128xbf16> to vector<12x128xbf16>
    %cst_12 = arith.constant dense<0.000000e+00> : vector<64x128xf32>
    %9 = tpu.matmul %6, %8, %cst_12 {dimension_numbers = #tpu.dot_dimension_numbers<[1], [0], [0], [1], [0, 0, 1, 1], [], []>} : vector<64x12xbf16>, vector<12x128xbf16>, vector<64x128xf32> -> vector<64x128xf32>
    %10 = arith.addf %4, %9 : vector<64x128xf32>
    %c0_13 = arith.constant 0 : index
    %c2 = arith.constant 2 : index
    %c0_14 = arith.constant 0 : index
    %c0_15 = arith.constant 0 : index
    %11 = vector.load %arg1[%c0_13, %c2, %c0_14, %c0_15] : memref<1x3x64x12xbf16, #tpu.memory_space<vmem>>, vector<1x1x64x12xbf16>
    %12 = vector.shape_cast %11 : vector<1x1x64x12xbf16> to vector<64x12xbf16>
    %c2_16 = arith.constant 2 : index
    %c0_17 = arith.constant 0 : index
    %c0_18 = arith.constant 0 : index
    %13 = vector.load %arg2[%c2_16, %c0_17, %c0_18] : memref<3x12x128xbf16, #tpu.memory_space<vmem>>, vector<1x12x128xbf16>
    %14 = vector.shape_cast %13 : vector<1x12x128xbf16> to vector<12x128xbf16>
    %cst_19 = arith.constant dense<0.000000e+00> : vector<64x128xf32>
    %15 = tpu.matmul %12, %14, %cst_19 {dimension_numbers = #tpu.dot_dimension_numbers<[1], [0], [0], [1], [0, 0, 1, 1], [], []>} : vector<64x12xbf16>, vector<12x128xbf16>, vector<64x128xf32> -> vector<64x128xf32>
    %16 = arith.addf %10, %15 : vector<64x128xf32>
    %cst_20 = arith.constant dense<0.000000e+00> : vector<128xf32>
    %17 = vector.multi_reduction <add>, %16, %cst_20 [0] : vector<64x128xf32> to vector<128xf32>
    %18 = vector.shape_cast %17 : vector<128xf32> to vector<1x128xf32>
    %cst_21 = arith.constant 1.562500e-02 : f32
    %19 = vector.broadcast %cst_21 : f32 to vector<1x128xf32>
    %20 = arith.mulf %18, %19 : vector<1x128xf32>
    %21 = vector.broadcast %20 : vector<1x128xf32> to vector<64x128xf32>
    %22 = arith.subf %16, %21 : vector<64x128xf32>
    %c0_22 = arith.constant 0 : index
    %c0_23 = arith.constant 0 : index
    %c0_24 = arith.constant 0 : index
    %23 = vector.load %arg4[%c0_22, %c0_23, %c0_24] : memref<1x1x128xf32, #tpu.memory_space<vmem>>, vector<1x1x128xf32>
    %24 = vector.shape_cast %23 : vector<1x1x128xf32> to vector<1x128xf32>
    %25 = vector.shape_cast %18 : vector<1x128xf32> to vector<1x1x128xf32>
    tpu.vector_store %arg4[%c0_22, %c0_23, %c0_24], %25 {strides = array<i32>} : memref<1x1x128xf32, #tpu.memory_space<vmem>>, vector<1x1x128xf32>,
    %26 = arith.mulf %22, %22 : vector<64x128xf32>
    %cst_25 = arith.constant dense<0.000000e+00> : vector<128xf32>
    %27 = vector.multi_reduction <add>, %26, %cst_25 [0] : vector<64x128xf32> to vector<128xf32>
    %28 = vector.shape_cast %27 : vector<128xf32> to vector<1x128xf32>
    %c0_26 = arith.constant 0 : index
    %c0_27 = arith.constant 0 : index
    %c0_28 = arith.constant 0 : index
    %29 = vector.load %arg5[%c0_26, %c0_27, %c0_28] : memref<1x1x128xf32, #tpu.memory_space<vmem>>, vector<1x1x128xf32>
    %30 = vector.shape_cast %29 : vector<1x1x128xf32> to vector<1x128xf32>
    %31 = vector.shape_cast %28 : vector<1x128xf32> to vector<1x1x128xf32>
    tpu.vector_store %arg5[%c0_26, %c0_27, %c0_28], %31 {strides = array<i32>} : memref<1x1x128xf32, #tpu.memory_space<vmem>>, vector<1x1x128xf32>,
    %32 = arith.truncf %16 : vector<64x128xf32> to vector<64x128xbf16>
    %c0_29 = arith.constant 0 : index
    %c0_30 = arith.constant 0 : index
    %c0_31 = arith.constant 0 : index
    %33 = vector.load %arg3[%c0_29, %c0_30, %c0_31] : memref<1x64x128xbf16, #tpu.memory_space<vmem>>, vector<1x64x128xbf16>
    %34 = vector.shape_cast %33 : vector<1x64x128xbf16> to vector<64x128xbf16>
    %35 = vector.shape_cast %32 : vector<64x128xbf16> to vector<1x64x128xbf16>
    tpu.vector_store %arg3[%c0_29, %c0_30, %c0_31], %35 {strides = array<i32>} : memref<1x64x128xbf16, #tpu.memory_space<vmem>>, vector<1x64x128xbf16>,
    return
  }
  func.func @transform_0(%arg0: i32) -> (i32, i32, i32, i32) {
    %c0_i32 = arith.constant 0 : i32
    %c0_i32_0 = arith.constant 0 : i32
    %c0_i32_1 = arith.constant 0 : i32
    %c0_i32_2 = arith.constant 0 : i32
    return %arg0, %c0_i32, %c0_i32_0, %c0_i32_1 : i32, i32, i32, i32
  }
  func.func @transform_1(%arg0: i32) -> (i32, i32, i32) {
    %c0_i32 = arith.constant 0 : i32
    %c0_i32_0 = arith.constant 0 : i32
    %c0_i32_1 = arith.constant 0 : i32
    %c0_i32_2 = arith.constant 0 : i32
    return %c0_i32, %c0_i32_0, %c0_i32_1 : i32, i32, i32
  }
  func.func @transform_2(%arg0: i32) -> (i32, i32, i32) {
    %c0_i32 = arith.constant 0 : i32
    %c0_i32_0 = arith.constant 0 : i32
    %c0_i32_1 = arith.constant 0 : i32
    return %arg0, %c0_i32, %c0_i32_0 : i32, i32, i32
  }
  func.func @transform_3(%arg0: i32) -> (i32, i32, i32) {
    %c0_i32 = arith.constant 0 : i32
    %c0_i32_0 = arith.constant 0 : i32
    %c0_i32_1 = arith.constant 0 : i32
    return %arg0, %c0_i32, %c0_i32_0 : i32, i32, i32
  }
  func.func @transform_4(%arg0: i32) -> (i32, i32, i32) {
    %c0_i32 = arith.constant 0 : i32
    %c0_i32_0 = arith.constant 0 : i32
    %c0_i32_1 = arith.constant 0 : i32
    return %arg0, %c0_i32, %c0_i32_0 : i32, i32, i32
  }
}

module attributes {stable_mosaic.version = 11 : i64} {
  func.func @_bn_relu_t_kernel(%arg0: i32, %arg1: i32, %arg2: memref<1x64x128xbf16, #tpu.memory_space<vmem>>, %arg3: memref<1x1x128xf32, #tpu.memory_space<vmem>>, %arg4: memref<1x1x128xf32, #tpu.memory_space<vmem>>, %arg5: memref<1x8x64xf32, #tpu.memory_space<vmem>>) attributes {dimension_semantics = [#tpu.dimension_semantics<parallel>, #tpu.dimension_semantics<parallel>], iteration_bounds = array<i64: 2, 1>, scalar_prefetch = 0 : i64, scratch_operands = 0 : i64, tpu.core_type = #tpu.core_type<tc>, window_params = [{transform_indices = @transform_0, window_bounds = array<i64: 1, 64, 128>}, {pipeline_mode = #tpu.pipeline_mode<synchronous>, transform_indices = @transform_1, window_bounds = array<i64: 1, 1, 128>}, {pipeline_mode = #tpu.pipeline_mode<synchronous>, transform_indices = @transform_2, window_bounds = array<i64: 1, 1, 128>}, {transform_indices = @transform_3, window_bounds = array<i64: 1, 8, 64>}]} {
    %c0 = arith.constant 0 : index
    %c0_0 = arith.constant 0 : index
    %c0_1 = arith.constant 0 : index
    %0 = vector.load %arg2[%c0, %c0_0, %c0_1] : memref<1x64x128xbf16, #tpu.memory_space<vmem>>, vector<1x64x128xbf16>
    %1 = vector.shape_cast %0 : vector<1x64x128xbf16> to vector<64x128xbf16>
    %2 = arith.extf %1 : vector<64x128xbf16> to vector<64x128xf32>
    %c0_2 = arith.constant 0 : index
    %c0_3 = arith.constant 0 : index
    %c0_4 = arith.constant 0 : index
    %3 = vector.load %arg3[%c0_2, %c0_3, %c0_4] : memref<1x1x128xf32, #tpu.memory_space<vmem>>, vector<1x1x128xf32>
    %4 = vector.shape_cast %3 : vector<1x1x128xf32> to vector<1x128xf32>
    %5 = vector.broadcast %4 : vector<1x128xf32> to vector<64x128xf32>
    %6 = arith.mulf %2, %5 : vector<64x128xf32>
    %c0_5 = arith.constant 0 : index
    %c0_6 = arith.constant 0 : index
    %c0_7 = arith.constant 0 : index
    %7 = vector.load %arg4[%c0_5, %c0_6, %c0_7] : memref<1x1x128xf32, #tpu.memory_space<vmem>>, vector<1x1x128xf32>
    %8 = vector.shape_cast %7 : vector<1x1x128xf32> to vector<1x128xf32>
    %9 = vector.broadcast %8 : vector<1x128xf32> to vector<64x128xf32>
    %10 = arith.addf %6, %9 : vector<64x128xf32>
    %cst = arith.constant 0.000000e+00 : f32
    %11 = vector.broadcast %cst : f32 to vector<64x128xf32>
    %12 = arith.maximumf %10, %11 : vector<64x128xf32>
    %13 = tpu.transpose %12, [1, 0] : vector<64x128xf32> -> vector<128x64xf32>
    %14 = vector.extract_strided_slice %13 {offsets = [0, 0], sizes = [8, 64], strides = [1, 1]} : vector<128x64xf32> to vector<8x64xf32>
    %c0_8 = arith.constant 0 : index
    %c0_9 = arith.constant 0 : index
    %c0_10 = arith.constant 0 : index
    %15 = vector.load %arg5[%c0_8, %c0_9, %c0_10] : memref<1x8x64xf32, #tpu.memory_space<vmem>>, vector<1x8x64xf32>
    %16 = vector.shape_cast %15 : vector<1x8x64xf32> to vector<8x64xf32>
    %17 = vector.shape_cast %14 : vector<8x64xf32> to vector<1x8x64xf32>
    tpu.vector_store %arg5[%c0_8, %c0_9, %c0_10], %17 {strides = array<i32>} : memref<1x8x64xf32, #tpu.memory_space<vmem>>, vector<1x8x64xf32>,
    return
  }
  func.func @transform_0(%arg0: i32, %arg1: i32) -> (i32, i32, i32) {
    %c0_i32 = arith.constant 0 : i32
    %c0_i32_0 = arith.constant 0 : i32
    return %arg0, %arg1, %c0_i32 : i32, i32, i32
  }
  func.func @transform_1(%arg0: i32, %arg1: i32) -> (i32, i32, i32) {
    %c0_i32 = arith.constant 0 : i32
    %c0_i32_0 = arith.constant 0 : i32
    %c0_i32_1 = arith.constant 0 : i32
    %c0_i32_2 = arith.constant 0 : i32
    return %c0_i32, %c0_i32_0, %c0_i32_1 : i32, i32, i32
  }
  func.func @transform_2(%arg0: i32, %arg1: i32) -> (i32, i32, i32) {
    %c0_i32 = arith.constant 0 : i32
    %c0_i32_0 = arith.constant 0 : i32
    %c0_i32_1 = arith.constant 0 : i32
    %c0_i32_2 = arith.constant 0 : i32
    return %c0_i32, %c0_i32_0, %c0_i32_1 : i32, i32, i32
  }
  func.func @transform_3(%arg0: i32, %arg1: i32) -> (i32, i32, i32) {
    %c0_i32 = arith.constant 0 : i32
    %c0_i32_0 = arith.constant 0 : i32
    return %arg0, %c0_i32, %arg1 : i32, i32, i32
  }
}

</mosaic_0001>

<llo_original>
// kernel: conv_block.3
$region0: #{conv_block.3}
  #allocation0 [shape = 'u32[]', space=smem, size = 0x4, offset = 0x4, fixed_abs, tag = 'smem constant byte address 0x4 - core index']
  #allocation1 [shape = 'u32[144,128]{1,0:T(1,128)}', space=vmem, size = 0x12000, scoped, tag = 'internal scratch']
  %s0 = inlined_call_operand.vmem [shape: bf16[2,64,128], index: 0, kind: input, shape index: {}]
  %s1 = inlined_call_operand.vmem [shape: f32[1,1,128], index: 1, kind: input, shape index: {}]
  %s2 = inlined_call_operand.vmem [shape: f32[1,1,128], index: 2, kind: input, shape index: {}]
  %s3 = inlined_call_operand.vmem [shape: f32[2,8,64], index: 3, kind: output, shape index: {}]
  %s4 = sld [smem:[#allocation0]]
  $region45: #{conv_block.3} parent=0
    _
  %s6 = ssub.s32 1, %s4
  %s7 = scalar_select 0, %s6, %s4
  loop: start=0, step=1, limit=4
  $region2: #{conv_block.3} parent=0 // loop_pre_header
    _
  $region3: #{conv_block.3} parent=0 // loop_header
    %s9 = sphi 0, %s13
    %p10 = scmp.ge.s32.totalorder %s9, 4
    %s16 = sphi 0, %s28
    %s17 = sphi 0, %s24
    %s18 = sphi 0, %s16
    %s19 = sphi 0, %s17
    %s20 = sphi 0, %s18
    %s21 = sphi 0, %s19
    %s33 = sphi 0, %s35
    %s36 = sphi 0, %s33
    %s37 = sphi 0, %s36
    %s53 = sphi 0, %s37
    %s57 = sphi 0, %s57
    %s59 = sphi 0, %s57
    %s60 = sphi 0, %s59
    %s74 = sphi 0, %s60
    %s78 = sphi 0, %s78
    %s80 = sphi 0, %s78
    %s81 = sphi 0, %s80
    %s95 = sphi 0, %s81
    %s103 = sphi 0, %s105
    %s106 = sphi 0, %s103
    %s107 = sphi 0, %s106
    %s123 = sphi 0, %s107
  $region4: #{conv_block.3} parent=0 // loop_header_branch
    %12 = sbr.rel (%p10) target = $region8
  $region5: #{conv_block.3} parent=0 // loop_body
    %s14 = ssub.s32 %s9, 1
    %s15 = ssub.s32 %s9, 2
    %s22 = sadd.s32 1, %s17
    %p23 = scmp.ge.s32.totalorder %s22, 1
    %s24 = scalar_select %p23, 0, %s22
    %s25 = sadd.s32 1, %s16
    %s26 = scalar_select %p23, %s25, %s16
    %p27 = scmp.ge.s32.totalorder %s26, 2
    %s28 = scalar_select %p27, 0, %s26
    %s29 = ssub.s32 %s16, %s28
    %s30 = ssub.s32 %s17, %s24
    %s31 = sor.u32 %s29, %s30
    %p32 = scmp.eq.s32.totalorder %s31, 0
    %s34 = sadd.s32 %s33, 1
    %s35 = scalar_select %p32, %s33, %s34
    %p38 = pneg %p32
    %p39 = scmp.eq.s32.totalorder %s9, 1
    %p40 = por %p38, %p39
    %p41 = scmp.ne.s32.totalorder %s33, %s36
    %p42 = scmp.eq.s32.totalorder %s9, 0
    %p43 = por %p41, %p42
    %p44 = scmp.ne.s32.totalorder %s33, %s36
    %p45 = scmp.eq.s32.totalorder %s14, 1
    %p46 = por %p44, %p45
    %p47 = scmp.ne.s32.totalorder %s36, %s37
    %p48 = scmp.eq.s32.totalorder %s14, 0
    %p49 = por %p47, %p48
    %p50 = scmp.ne.s32.totalorder %s36, %s37
    %p51 = scmp.eq.s32.totalorder %s15, 1
    %p52 = por %p50, %p51
    %p54 = scmp.ne.s32.totalorder %s37, %s53
    %p55 = scmp.eq.s32.totalorder %s15, 0
    %p56 = por %p54, %p55
    %s58 = sadd.s32 %s57, 1
    %p61 = scmp.eq.s32.totalorder %s9, 1
    %p62 = scmp.ne.s32.totalorder %s57, %s59
    %p63 = scmp.eq.s32.totalorder %s9, 0
    %p64 = por %p62, %p63
    %p65 = scmp.ne.s32.totalorder %s57, %s59
    %p66 = scmp.eq.s32.totalorder %s14, 1
    %p67 = por %p65, %p66
    %p68 = scmp.ne.s32.totalorder %s59, %s60
    %p69 = scmp.eq.s32.totalorder %s14, 0
    %p70 = por %p68, %p69
    %p71 = scmp.ne.s32.totalorder %s59, %s60
    %p72 = scmp.eq.s32.totalorder %s15, 1
    %p73 = por %p71, %p72
    %p75 = scmp.ne.s32.totalorder %s60, %s74
    %p76 = scmp.eq.s32.totalorder %s15, 0
    %p77 = por %p75, %p76
    %s79 = sadd.s32 %s78, 1
    %p82 = scmp.eq.s32.totalorder %s9, 1
    %p83 = scmp.ne.s32.totalorder %s78, %s80
    %p84 = scmp.eq.s32.totalorder %s9, 0
    %p85 = por %p83, %p84
    %p86 = scmp.ne.s32.totalorder %s78, %s80
    %p87 = scmp.eq.s32.totalorder %s14, 1
    %p88 = por %p86, %p87
    %p89 = scmp.ne.s32.totalorder %s80, %s81
    %p90 = scmp.eq.s32.totalorder %s14, 0
    %p91 = por %p89, %p90
    %p92 = scmp.ne.s32.totalorder %s80, %s81
    %p93 = scmp.eq.s32.totalorder %s15, 1
    %p94 = por %p92, %p93
    %p96 = scmp.ne.s32.totalorder %s81, %s95
    %p97 = scmp.eq.s32.totalorder %s15, 0
    %p98 = por %p96, %p97
    %s99 = ssub.s32 %s16, %s28
    %s100 = ssub.s32 %s17, %s24
    %s101 = sor.u32 %s99, %s100
    %p102 = scmp.eq.s32.totalorder %s101, 0
    %s104 = sadd.s32 %s103, 1
    %s105 = scalar_select %p102, %s103, %s104
    %p108 = pneg %p102
    %p109 = scmp.eq.s32.totalorder %s9, 1
    %p110 = por %p108, %p109
    %p111 = scmp.ne.s32.totalorder %s103, %s106
    %p112 = scmp.eq.s32.totalorder %s9, 0
    %p113 = por %p111, %p112
    %p114 = scmp.ne.s32.totalorder %s103, %s106
    %p115 = scmp.eq.s32.totalorder %s14, 1
    %p116 = por %p114, %p115
    %p117 = scmp.ne.s32.totalorder %s106, %s107
    %p118 = scmp.eq.s32.totalorder %s14, 0
    %p119 = por %p117, %p118
    %p120 = scmp.ne.s32.totalorder %s106, %s107
    %p121 = scmp.eq.s32.totalorder %s15, 1
    %p122 = por %p120, %p121
    %p124 = scmp.ne.s32.totalorder %s107, %s123
    %p125 = scmp.eq.s32.totalorder %s15, 0
    %p126 = por %p124, %p125
    %p127 = scmp.le.s32.totalorder 1, %s9
    %p128 = scmp.lt.s32.totalorder %s9, 3
    %p129 = pnand %p127, %p128
    %p130 = pneg %p129
    // Predicated region
    $region9: #{conv_block.3} parent=5 // pred_check
      _
    $region10: #{conv_block.3} parent=5 // pred_check_branch
      %132 = sbr.rel (%p129) target = $region12
    $region11: #{conv_block.3} parent=5 // pred_region
      %s133 = ssub.s32 %s9, 1
      // Predicated region
      $region13: #{conv_block.3} parent=11 // pred_check
        %p134 = pneg %p70
      $region14: #{conv_block.3} parent=11 // pred_check_branch
        %136 = sbr.rel (%p134) target = $region16
      $region15: #{conv_block.3} parent=11 // pred_region
        _
      $region16: #{conv_block.3} parent=11 // pred_fallthru
        _
      // Predicated region
      $region17: #{conv_block.3} parent=11 // pred_check
        %p137 = pneg %p91
      $region18: #{conv_block.3} parent=11 // pred_check_branch
        %139 = sbr.rel (%p137) target = $region20
      $region19: #{conv_block.3} parent=11 // pred_region
        _
      $region20: #{conv_block.3} parent=11 // pred_fallthru
        _
    $region12: #{conv_block.3} parent=5 // pred_fallthru
      _
    %p140 = scmp.lt.s32.totalorder %s9, 2
    // Predicated region
    $region21: #{conv_block.3} parent=5 // pred_check
      %p141 = pneg %p140
    $region22: #{conv_block.3} parent=5 // pred_check_branch
      %143 = sbr.rel (%p141) target = $region24
    $region23: #{conv_block.3} parent=5 // pred_region
      // Predicated region
      $region25: #{conv_block.3} parent=23 // pred_check
        %p144 = pneg %p43
      $region26: #{conv_block.3} parent=23 // pred_check_branch
        %146 = sbr.rel (%p144) target = $region28
      $region27: #{conv_block.3} parent=23 // pred_region
        %s147 = smul.u32 8, %s17
        %p148 = scmp.lt.s32.totalorder %s16, 1
        %s149 = scalar_select %p148, %s16, 1
        %p150 = scmp.lt.s32.totalorder %s147, 7
        %s151 = scalar_select %p150, %s147, 7
        %s152 = smul.addr %s149, 8
        %s153 = sadd.s32 %s151, %s152
        %s154 = smul.addr %s153, 4
        %s155 = scalar_lea.vmem %s0, %s154
        %s156 = smul.u32 8, %s17
      $region28: #{conv_block.3} parent=23 // pred_fallthru
        _
    $region24: #{conv_block.3} parent=5 // pred_fallthru
      _
    %p157 = scmp.le.s32.totalorder 1, %s9
    %p158 = scmp.lt.s32.totalorder %s9, 3
    %p159 = pnand %p157, %p158
    %p160 = pneg %p159
    // Predicated region
    $region29: #{conv_block.3} parent=5 // pred_check
      _
    $region30: #{conv_block.3} parent=5 // pred_check_branch
      %162 = sbr.rel (%p159) target = $region32
    $region31: #{conv_block.3} parent=5 // pred_region
      %s163 = ssub.s32 %s9, 1
      %s164 = smul.u32 8, %s19
      %p165 = scmp.lt.s32.totalorder %s18, 1
      %s166 = scalar_select %p165, %s18, 1
      %p167 = scmp.lt.s32.totalorder %s164, 7
      %s168 = scalar_select %p167, %s164, 7
      %s169 = smul.addr %s166, 8
      %s170 = sadd.s32 %s168, %s169
      %s171 = smul.addr %s170, 4
      %s172 = scalar_lea.vmem %s0, %s171
      %p173 = pneg %p49
      %p174 = pneg %p46
      %p175 = pneg %p70
      %p176 = pneg %p67
      %p177 = pneg %p91
      %p178 = pneg %p88
      %p179 = pneg %p119
      %p180 = pneg %p116
      %p181 = scmp.lt.s32.totalorder %s18, 1
      %s182 = scalar_select %p181, %s18, 1
      %p183 = scmp.lt.s32.totalorder %s19, 0
      %s184 = scalar_select %p183, %s19, 0
      %s185 = sadd.s32 %s184, %s182
      %s186 = smul.addr %s185, 8
      %s187 = scalar_lea.vmem %s3, %s186
      %s188 = smul.u32 8, %s19
      %p189 = scmp.lt.s32.totalorder %s18, 1
      %s190 = scalar_select %p189, %s18, 1
      %p191 = scmp.lt.s32.totalorder %s188, 7
      %s192 = scalar_select %p191, %s188, 7
      %s193 = smul.addr %s190, 8
      %s194 = sadd.s32 %s192, %s193
      %s195 = smul.addr %s194, 4
      %s196 = scalar_lea.vmem %s0, %s195
      %s197 = smul.u32 8, %s19
      %p198 = scmp.lt.s32.totalorder %s18, 1
      %s199 = scalar_select %p198, %s18, 1
      %p200 = scmp.lt.s32.totalorder %s19, 0
      %s201 = scalar_select %p200, %s19, 0
      %s202 = sadd.s32 %s201, %s199
      %s203 = smul.addr %s202, 8
      %s204 = scalar_lea.vmem %s3, %s203
      %v205 = vld [vmem:[%s196] sm:$0xf]
      %v206 = vld [vmem:[%s196 + $0x4] sm:$0xf]
      %v207 = vld [vmem:[%s196 + $0x8] sm:$0xf]
      %v208 = vld [vmem:[%s196 + $0xc] sm:$0xf]
      %v209 = vld [vmem:[%s196 + $0x10] sm:$0xf]
      %v210 = vld [vmem:[%s196 + $0x14] sm:$0xf]
      %v211 = vld [vmem:[%s196 + $0x18] sm:$0xf]
      %v212 = vld [vmem:[%s196 + $0x1c] sm:$0xf]
      %v213 = vunpack.c.l.bf16 %v205
      %v214 = vunpack.c.l.bf16 %v206
      %v215 = vunpack.c.l.bf16 %v207
      %v216 = vunpack.c.l.bf16 %v208
      %v217 = vunpack.c.l.bf16 %v209
      %v218 = vunpack.c.l.bf16 %v210
      %v219 = vunpack.c.l.bf16 %v211
      %v220 = vunpack.c.l.bf16 %v212
      %v221 = vld [vmem:[%s1] sm:$0x1]
      %v223 = vlaneseq
      %v224 = vshrl.u32 %v223, 7
      %v225 = vsub.s32 0, %v224
      %v226 = vrot.slane %v221, %v225
      %v228 = vmul.f32 %v213, %v226
      %v229 = vmul.f32 %v214, %v226
      %v230 = vmul.f32 %v215, %v226
      %v231 = vmul.f32 %v216, %v226
      %v232 = vmul.f32 %v217, %v226
      %v233 = vmul.f32 %v218, %v226
      %v234 = vmul.f32 %v219, %v226
      %v235 = vmul.f32 %v220, %v226
      %v236 = vld [vmem:[%s2] sm:$0x1]
      %v238 = vlaneseq
      %v239 = vshrl.u32 %v238, 7
      %v240 = vsub.s32 0, %v239
      %v241 = vrot.slane %v236, %v240
      %v243 = vadd.f32 %v228, %v241
      %v244 = vadd.f32 %v229, %v241
      %v245 = vadd.f32 %v230, %v241
      %v246 = vadd.f32 %v231, %v241
      %v247 = vadd.f32 %v232, %v241
      %v248 = vadd.f32 %v233, %v241
      %v249 = vadd.f32 %v234, %v241
      %v250 = vadd.f32 %v235, %v241
      %v251 = vmax.f32 %v243, 0.0
      %v252 = vmax.f32 %v244, 0.0
      %v253 = vmax.f32 %v245, 0.0
      %v254 = vmax.f32 %v246, 0.0
      %v255 = vmax.f32 %v247, 0.0
      %v256 = vmax.f32 %v248, 0.0
      %v257 = vmax.f32 %v249, 0.0
      %v258 = vmax.f32 %v250, 0.0
      %259 = vxpose.xlu0.b32.start [1/16] %v251, 128
      %260 = vxpose.xlu0.b32.cont [2/16] %v252, 128
      %261 = vxpose.xlu0.b32.cont [3/16] %v253, 128
      %262 = vxpose.xlu0.b32.cont [4/16] %v254, 128
      %263 = vxpose.xlu0.b32.cont [5/16] %v255, 128
      %264 = vxpose.xlu0.b32.cont [6/16] %v256, 128
      %265 = vxpose.xlu0.b32.cont [7/16] %v257, 128
      %266 = vxpose.xlu0.b32.cont [8/16] %v258, 128
      %267 = vxpose.xlu0.b32.cont [9/16] 0.0, 128
      %268 = vxpose.xlu0.b32.cont [10/16] 0.0, 128
      %269 = vxpose.xlu0.b32.cont [11/16] 0.0, 128
      %270 = vxpose.xlu0.b32.cont [12/16] 0.0, 128
      %271 = vxpose.xlu0.b32.cont [13/16] 0.0, 128
      %272 = vxpose.xlu0.b32.cont [14/16] 0.0, 128
      %273 = vxpose.xlu0.b32.cont [15/16] 0.0, 128
      %274 = vxpose.xlu0.b32.end [16/16] 0.0, 128
      %v275 = vpop.trf.xlu0
      %v276 = vpop.trf.xlu0
      %v277 = vpop.trf.xlu0
      %v278 = vpop.trf.xlu0
      %v279 = vpop.trf.xlu0
      %v280 = vpop.trf.xlu0
      %v281 = vpop.trf.xlu0
      %v282 = vpop.trf.xlu0
      %v283 = vpop.trf.xlu0
      %v284 = vpop.trf.xlu0
      %v285 = vpop.trf.xlu0
      %v286 = vpop.trf.xlu0
      %v287 = vpop.trf.xlu0
      %v288 = vpop.trf.xlu0
      %v289 = vpop.trf.xlu0
      %v290 = vpop.trf.xlu0
      %vm291 = vcmask 523264
      %292 = vst.msk [vmem:[%s204] sm:$0xff] %vm291, %v275
      %p293 = scmp.lt.s32.totalorder %s18, 1
      %s294 = scalar_select %p293, %s18, 1
      %p295 = scmp.lt.s32.totalorder %s19, 0
      %s296 = scalar_select %p295, %s19, 0
      %s297 = sadd.s32 %s296, %s294
      %s298 = smul.addr %s297, 8
      %s299 = scalar_lea.vmem %s3, %s298
      // Predicated region
      $region33: #{conv_block.3} parent=31 // pred_check
        %p300 = pneg %p116
      $region34: #{conv_block.3} parent=31 // pred_check_branch
        %302 = sbr.rel (%p300) target = $region36
      $region35: #{conv_block.3} parent=31 // pred_region
        _
      $region36: #{conv_block.3} parent=31 // pred_fallthru
        _
    $region32: #{conv_block.3} parent=5 // pred_fallthru
      _
    %p303 = scmp.le.s32.totalorder 2, %s9
    // Predicated region
    $region37: #{conv_block.3} parent=5 // pred_check
      %p304 = pneg %p303
    $region38: #{conv_block.3} parent=5 // pred_check_branch
      %306 = sbr.rel (%p304) target = $region40
    $region39: #{conv_block.3} parent=5 // pred_region
      %s307 = ssub.s32 %s9, 2
      // Predicated region
      $region41: #{conv_block.3} parent=39 // pred_check
        %p308 = pneg %p122
      $region42: #{conv_block.3} parent=39 // pred_check_branch
        %310 = sbr.rel (%p308) target = $region44
      $region43: #{conv_block.3} parent=39 // pred_region
        %p311 = scmp.lt.s32.totalorder %s20, 1
        %s312 = scalar_select %p311, %s20, 1
        %p313 = scmp.lt.s32.totalorder %s21, 0
        %s314 = scalar_select %p313, %s21, 0
        %s315 = sadd.s32 %s314, %s312
        %s316 = smul.addr %s315, 8
        %s317 = scalar_lea.vmem %s3, %s316
      $region44: #{conv_block.3} parent=39 // pred_fallthru
        _
    $region40: #{conv_block.3} parent=5 // pred_fallthru
      _
  $region6: #{conv_block.3} parent=0 // loop_footer
    %s13 = sadd.s32 1, %s9
  $region7: #{conv_block.3} parent=0 // loop_footer_branch
    %8 = sbr.rel target = $region3
  $region8: #{conv_block.3} parent=0 // loop_exit
    _

// kernel: conv_block.2
$region0: #{conv_block.2}
  #allocation0 [shape = 'u32[]', space=smem, size = 0x4, offset = 0x4, fixed_abs, tag = 'smem constant byte address 0x4 - core index']
  #allocation1 [shape = 'u32[144,128]{1,0:T(1,128)}', space=vmem, size = 0x12000, scoped, tag = 'internal scratch']
  %s0 = inlined_call_operand.vmem [shape: bf16[2,3,64,12], index: 0, kind: input, shape index: {}]
  %s1 = inlined_call_operand.vmem [shape: bf16[3,12,128], index: 1, kind: input, shape index: {}]
  %s2 = inlined_call_operand.vmem [shape: bf16[2,64,128], index: 2, kind: output, shape index: {0}]
  %s3 = inlined_call_operand.vmem [shape: f32[2,1,128], index: 3, kind: output, shape index: {1}]
  %s4 = inlined_call_operand.vmem [shape: f32[2,1,128], index: 4, kind: output, shape index: {2}]
  %5 = xla_tuple %s2, %s3, %s4
  %s6 = sld [smem:[#allocation0]]
  $region57: #{conv_block.2} parent=0
    _
  %s8 = ssub.s32 1, %s6
  %s9 = scalar_select 0, %s8, %s6
  loop: start=0, step=1, limit=4
  $region2: #{conv_block.2} parent=0 // loop_pre_header
    _
  $region3: #{conv_block.2} parent=0 // loop_header
    %s11 = sphi 0, %s15
    %p12 = scmp.ge.s32.totalorder %s11, 4
    %s21 = sphi 0, %s23
    %s24 = sphi 0, %s21
    %s25 = sphi 0, %s24
    %s41 = sphi 0, %s25
    %s45 = sphi 0, %s45
    %s47 = sphi 0, %s45
    %s48 = sphi 0, %s47
    %s62 = sphi 0, %s48
    %s68 = sphi 0, %s70
    %s71 = sphi 0, %s68
    %s72 = sphi 0, %s71
    %s88 = sphi 0, %s72
    %s94 = sphi 0, %s96
    %s97 = sphi 0, %s94
    %s98 = sphi 0, %s97
    %s114 = sphi 0, %s98
    %s120 = sphi 0, %s122
    %s123 = sphi 0, %s120
    %s124 = sphi 0, %s123
    %s140 = sphi 0, %s124
  $region4: #{conv_block.2} parent=0 // loop_header_branch
    %14 = sbr.rel (%p12) target = $region8
  $region5: #{conv_block.2} parent=0 // loop_body
    %s16 = ssub.s32 %s11, 1
    %s17 = ssub.s32 %s11, 2
    %s18 = sadd.s32 %s11, 1
    %s19 = ssub.s32 %s11, %s18
    %p20 = scmp.eq.s32.totalorder %s19, 0
    %s22 = sadd.s32 %s21, 1
    %s23 = scalar_select %p20, %s21, %s22
    %p26 = pneg %p20
    %p27 = scmp.eq.s32.totalorder %s11, 1
    %p28 = por %p26, %p27
    %p29 = scmp.ne.s32.totalorder %s21, %s24
    %p30 = scmp.eq.s32.totalorder %s11, 0
    %p31 = por %p29, %p30
    %p32 = scmp.ne.s32.totalorder %s21, %s24
    %p33 = scmp.eq.s32.totalorder %s16, 1
    %p34 = por %p32, %p33
    %p35 = scmp.ne.s32.totalorder %s24, %s25
    %p36 = scmp.eq.s32.totalorder %s16, 0
    %p37 = por %p35, %p36
    %p38 = scmp.ne.s32.totalorder %s24, %s25
    %p39 = scmp.eq.s32.totalorder %s17, 1
    %p40 = por %p38, %p39
    %p42 = scmp.ne.s32.totalorder %s25, %s41
    %p43 = scmp.eq.s32.totalorder %s17, 0
    %p44 = por %p42, %p43
    %s46 = sadd.s32 %s45, 1
    %p49 = scmp.eq.s32.totalorder %s11, 1
    %p50 = scmp.ne.s32.totalorder %s45, %s47
    %p51 = scmp.eq.s32.totalorder %s11, 0
    %p52 = por %p50, %p51
    %p53 = scmp.ne.s32.totalorder %s45, %s47
    %p54 = scmp.eq.s32.totalorder %s16, 1
    %p55 = por %p53, %p54
    %p56 = scmp.ne.s32.totalorder %s47, %s48
    %p57 = scmp.eq.s32.totalorder %s16, 0
    %p58 = por %p56, %p57
    %p59 = scmp.ne.s32.totalorder %s47, %s48
    %p60 = scmp.eq.s32.totalorder %s17, 1
    %p61 = por %p59, %p60
    %p63 = scmp.ne.s32.totalorder %s48, %s62
    %p64 = scmp.eq.s32.totalorder %s17, 0
    %p65 = por %p63, %p64
    %s66 = ssub.s32 %s11, %s18
    %p67 = scmp.eq.s32.totalorder %s66, 0
    %s69 = sadd.s32 %s68, 1
    %s70 = scalar_select %p67, %s68, %s69
    %p73 = pneg %p67
    %p74 = scmp.eq.s32.totalorder %s11, 1
    %p75 = por %p73, %p74
    %p76 = scmp.ne.s32.totalorder %s68, %s71
    %p77 = scmp.eq.s32.totalorder %s11, 0
    %p78 = por %p76, %p77
    %p79 = scmp.ne.s32.totalorder %s68, %s71
    %p80 = scmp.eq.s32.totalorder %s16, 1
    %p81 = por %p79, %p80
    %p82 = scmp.ne.s32.totalorder %s71, %s72
    %p83 = scmp.eq.s32.totalorder %s16, 0
    %p84 = por %p82, %p83
    %p85 = scmp.ne.s32.totalorder %s71, %s72
    %p86 = scmp.eq.s32.totalorder %s17, 1
    %p87 = por %p85, %p86
    %p89 = scmp.ne.s32.totalorder %s72, %s88
    %p90 = scmp.eq.s32.totalorder %s17, 0
    %p91 = por %p89, %p90
    %s92 = ssub.s32 %s11, %s18
    %p93 = scmp.eq.s32.totalorder %s92, 0
    %s95 = sadd.s32 %s94, 1
    %s96 = scalar_select %p93, %s94, %s95
    %p99 = pneg %p93
    %p100 = scmp.eq.s32.totalorder %s11, 1
    %p101 = por %p99, %p100
    %p102 = scmp.ne.s32.totalorder %s94, %s97
    %p103 = scmp.eq.s32.totalorder %s11, 0
    %p104 = por %p102, %p103
    %p105 = scmp.ne.s32.totalorder %s94, %s97
    %p106 = scmp.eq.s32.totalorder %s16, 1
    %p107 = por %p105, %p106
    %p108 = scmp.ne.s32.totalorder %s97, %s98
    %p109 = scmp.eq.s32.totalorder %s16, 0
    %p110 = por %p108, %p109
    %p111 = scmp.ne.s32.totalorder %s97, %s98
    %p112 = scmp.eq.s32.totalorder %s17, 1
    %p113 = por %p111, %p112
    %p115 = scmp.ne.s32.totalorder %s98, %s114
    %p116 = scmp.eq.s32.totalorder %s17, 0
    %p117 = por %p115, %p116
    %s118 = ssub.s32 %s11, %s18
    %p119 = scmp.eq.s32.totalorder %s118, 0
    %s121 = sadd.s32 %s120, 1
    %s122 = scalar_select %p119, %s120, %s121
    %p125 = pneg %p119
    %p126 = scmp.eq.s32.totalorder %s11, 1
    %p127 = por %p125, %p126
    %p128 = scmp.ne.s32.totalorder %s120, %s123
    %p129 = scmp.eq.s32.totalorder %s11, 0
    %p130 = por %p128, %p129
    %p131 = scmp.ne.s32.totalorder %s120, %s123
    %p132 = scmp.eq.s32.totalorder %s16, 1
    %p133 = por %p131, %p132
    %p134 = scmp.ne.s32.totalorder %s123, %s124
    %p135 = scmp.eq.s32.totalorder %s16, 0
    %p136 = por %p134, %p135
    %p137 = scmp.ne.s32.totalorder %s123, %s124
    %p138 = scmp.eq.s32.totalorder %s17, 1
    %p139 = por %p137, %p138
    %p141 = scmp.ne.s32.totalorder %s124, %s140
    %p142 = scmp.eq.s32.totalorder %s17, 0
    %p143 = por %p141, %p142
    %p144 = scmp.le.s32.totalorder 1, %s11
    %p145 = scmp.lt.s32.totalorder %s11, 3
    %p146 = pnand %p144, %p145
    %p147 = pneg %p146
    // Predicated region
    $region9: #{conv_block.2} parent=5 // pred_check
      _
    $region10: #{conv_block.2} parent=5 // pred_check_branch
      %149 = sbr.rel (%p146) target = $region12
    $region11: #{conv_block.2} parent=5 // pred_region
      %s150 = ssub.s32 %s11, 1
      // Predicated region
      $region13: #{conv_block.2} parent=11 // pred_check
        %p151 = pneg %p58
      $region14: #{conv_block.2} parent=11 // pred_check_branch
        %153 = sbr.rel (%p151) target = $region16
      $region15: #{conv_block.2} parent=11 // pred_region
        _
      $region16: #{conv_block.2} parent=11 // pred_fallthru
        _
    $region12: #{conv_block.2} parent=5 // pred_fallthru
      _
    %p154 = scmp.lt.s32.totalorder %s11, 2
    // Predicated region
    $region17: #{conv_block.2} parent=5 // pred_check
      %p155 = pneg %p154
    $region18: #{conv_block.2} parent=5 // pred_check_branch
      %157 = sbr.rel (%p155) target = $region20
    $region19: #{conv_block.2} parent=5 // pred_region
      // Predicated region
      $region21: #{conv_block.2} parent=19 // pred_check
        %p158 = pneg %p31
      $region22: #{conv_block.2} parent=19 // pred_check_branch
        %160 = sbr.rel (%p158) target = $region24
      $region23: #{conv_block.2} parent=19 // pred_region
        %p161 = scmp.lt.s32.totalorder %s11, 1
        %s162 = scalar_select %p161, %s11, 1
        %s163 = smul.addr %s162, 24
        %s164 = smul.addr %s163, 4
        %s165 = scalar_lea.vmem %s0, %s164
      $region24: #{conv_block.2} parent=19 // pred_fallthru
        _
    $region20: #{conv_block.2} parent=5 // pred_fallthru
      _
    %p166 = scmp.le.s32.totalorder 1, %s11
    %p167 = scmp.lt.s32.totalorder %s11, 3
    %p168 = pnand %p166, %p167
    %p169 = pneg %p168
    // Predicated region
    $region25: #{conv_block.2} parent=5 // pred_check
      _
    $region26: #{conv_block.2} parent=5 // pred_check_branch
      %171 = sbr.rel (%p168) target = $region28
    $region27: #{conv_block.2} parent=5 // pred_region
      %s172 = ssub.s32 %s11, 1
      %p173 = scmp.lt.s32.totalorder %s16, 1
      %s174 = scalar_select %p173, %s16, 1
      %s175 = smul.addr %s174, 24
      %s176 = smul.addr %s175, 4
      %s177 = scalar_lea.vmem %s0, %s176
      %p178 = pneg %p37
      %p179 = pneg %p34
      %p180 = pneg %p58
      %p181 = pneg %p55
      %p182 = pneg %p84
      %p183 = pneg %p81
      %p184 = scmp.lt.s32.totalorder %s16, 1
      %s185 = scalar_select %p184, %s16, 1
      %s186 = smul.addr %s185, 8
      %s187 = smul.addr %s186, 4
      %s188 = scalar_lea.vmem %s2, %s187
      %p189 = pneg %p110
      %p190 = pneg %p107
      %p191 = scmp.lt.s32.totalorder %s16, 1
      %s192 = scalar_select %p191, %s16, 1
      %s193 = scalar_lea.vmem %s3, %s192
      %p194 = pneg %p136
      %p195 = pneg %p133
      %p196 = scmp.lt.s32.totalorder %s16, 1
      %s197 = scalar_select %p196, %s16, 1
      %s198 = scalar_lea.vmem %s4, %s197
      %p199 = scmp.lt.s32.totalorder %s16, 1
      %s200 = scalar_select %p199, %s16, 1
      %s201 = smul.addr %s200, 24
      %s202 = smul.addr %s201, 4
      %s203 = scalar_lea.vmem %s0, %s202
      %p204 = scmp.lt.s32.totalorder %s16, 1
      %s205 = scalar_select %p204, %s16, 1
      %s206 = smul.addr %s205, 8
      %s207 = smul.addr %s206, 4
      %s208 = scalar_lea.vmem %s2, %s207
      %p209 = scmp.lt.s32.totalorder %s16, 1
      %s210 = scalar_select %p209, %s16, 1
      %s211 = scalar_lea.vmem %s3, %s210
      %p212 = scmp.lt.s32.totalorder %s16, 1
      %s213 = scalar_select %p212, %s16, 1
      %s214 = scalar_lea.vmem %s4, %s213
      %v216 = vld [vmem:[%s203] sm:$0xf]
      %v217 = vld [vmem:[%s203 + $0x4] sm:$0xf]
      %v218 = vld [vmem:[%s203 + $0x8] sm:$0xf]
      %v219 = vld [vmem:[%s203 + $0xc] sm:$0xf]
      %v220 = vld [vmem:[%s203 + $0x10] sm:$0xf]
      %v221 = vld [vmem:[%s203 + $0x14] sm:$0xf]
      %v222 = vld [vmem:[%s203 + $0x18] sm:$0xf]
      %v223 = vld [vmem:[%s203 + $0x1c] sm:$0xf]
      %v224 = vld [vmem:[%s1] sm:$0xf]
      %v225 = vld [vmem:[%s1 + $0x4] sm:$0x3]
      %s226 = scalar_lea.vmem %s203, 32
      %v227 = vld [vmem:[%s226] sm:$0xf]
      %v228 = vld [vmem:[%s226 + $0x4] sm:$0xf]
      %v229 = vld [vmem:[%s226 + $0x8] sm:$0xf]
      %v230 = vld [vmem:[%s226 + $0xc] sm:$0xf]
      %v231 = vld [vmem:[%s226 + $0x10] sm:$0xf]
      %v232 = vld [vmem:[%s226 + $0x14] sm:$0xf]
      %v233 = vld [vmem:[%s226 + $0x18] sm:$0xf]
      %v234 = vld [vmem:[%s226 + $0x1c] sm:$0xf]
      %s235 = scalar_lea.vmem %s1, 8
      %v236 = vld [vmem:[%s235] sm:$0xf]
      %v237 = vld [vmem:[%s235 + $0x4] sm:$0x3]
      %v246 = vunpack.c.l.b16 %v227
      %v247 = vunpack.c.l.b16 %v228
      %v248 = vunpack.c.l.b16 %v229
      %v249 = vunpack.c.l.b16 %v230
      %v250 = vunpack.c.l.b16 %v231
      %v251 = vunpack.c.l.b16 %v232
      %v252 = vunpack.c.l.b16 %v233
      %v253 = vunpack.c.l.b16 %v234
      %v254 = vpack.c.b16 %v247, %v246
      %v255 = vpack.c.b16 %v249, %v248
      %v256 = vpack.c.b16 %v251, %v250
      %v257 = vpack.c.b16 %v253, %v252
      %v260 = vunpack.c.l.b16 %v236
      %v261 = vunpack.c.l.b16 %v237
      %v262 = vpack.c.b16 %v261, %v260
      %vm263 = vcmask 97280
      %v265 = vsel %vm263, %v254, 0
      %v268 = vsel %vm263, %v255, 0
      %v271 = vsel %vm263, %v256, 0
      %v274 = vsel %vm263, %v257, 0
      %vm276 = vcmask 1045504
      %v278 = vsel %vm276, %v262, 0
      %280 = vmatprep.subr.bf16.mxu0 0
      %281 = vmatpush1.bf16.msra.mxu0 %v278
      %282 = vmatprep.subr.bf16.mxu0 0
      %283 = vmatpush1.bf16.msra.mxu0 0
      %284 = vmatprep.subr.bf16.mxu0 0
      %285 = vmatpush1.bf16.msra.mxu0 0
      %286 = vmatprep.subr.bf16.mxu0 0
      %287 = vmatpush1.bf16.msra.mxu0 0
      %288 = vmatprep.subr.bf16.mxu0 0
      %289 = vmatpush1.bf16.msra.mxu0 0
      %290 = vmatprep.subr.bf16.mxu0 0
      %291 = vmatpush1.bf16.msra.mxu0 0
      %292 = vmatprep.subr.bf16.mxu0 0
      %293 = vmatpush1.bf16.msra.mxu0 0
      %294 = vmatprep.subr.bf16.mxu0 0
      %295 = vmatpush1.bf16.msra.mxu0 0
      %296 = vmatprep.subr.bf16.mxu0 0
      %297 = vmatpush1.bf16.msra.mxu0 0
      %298 = vmatprep.subr.bf16.mxu0 0
      %299 = vmatpush1.bf16.msra.mxu0 0
      %300 = vmatprep.subr.bf16.mxu0 0
      %301 = vmatpush1.bf16.msra.mxu0 0
      %302 = vmatprep.subr.bf16.mxu0 0
      %303 = vmatpush1.bf16.msra.mxu0 0
      %304 = vmatprep.subr.bf16.mxu0 0
      %305 = vmatpush1.bf16.msra.mxu0 0
      %306 = vmatprep.subr.bf16.mxu0 0
      %307 = vmatpush1.bf16.msra.mxu0 0
      %308 = vmatprep.subr.bf16.mxu0 0
      %309 = vmatpush1.bf16.msra.mxu0 0
      %310 = vmatprep.subr.bf16.mxu0 0
      %311 = vmatpush1.bf16.msra.mxu0 0
      %312 = vmatprep.mubr.bf16.mxu0 0
      %313 = vmatmul.mubr.bf16.gmra.mrb[0].mxu0 %v265
      %v314 = vpop.f32.mrb[0].mxu0
      %v315 = vadd.f32 0.0, %v314
      %v316 = vpop.f32.mrb[0].mxu0
      %v317 = vpop.f32.mrb[0].mxu0
      %v318 = vadd.f32 0.0, %v317
      %v319 = vpop.f32.mrb[0].mxu0
      %320 = vmatprep.mubr.bf16.mxu0 0
      %321 = vmatmul.mubr.bf16.gmra.mrb[0].mxu0 %v268
      %v322 = vpop.f32.mrb[0].mxu0
      %v323 = vadd.f32 0.0, %v322
      %v324 = vpop.f32.mrb[0].mxu0
      %v325 = vpop.f32.mrb[0].mxu0
      %v326 = vadd.f32 0.0, %v325
      %v327 = vpop.f32.mrb[0].mxu0
      %328 = vmatprep.mubr.bf16.mxu0 0
      %329 = vmatmul.mubr.bf16.gmra.mrb[0].mxu0 %v271
      %v330 = vpop.f32.mrb[0].mxu0
      %v331 = vadd.f32 0.0, %v330
      %v332 = vpop.f32.mrb[0].mxu0
      %v333 = vpop.f32.mrb[0].mxu0
      %v334 = vadd.f32 0.0, %v333
      %v335 = vpop.f32.mrb[0].mxu0
      %336 = vmatprep.mubr.bf16.mxu0 0
      %337 = vmatmul.mubr.bf16.gmra.mrb[0].mxu0 %v274
      %v338 = vpop.f32.mrb[0].mxu0
      %v339 = vadd.f32 0.0, %v338
      %v340 = vpop.f32.mrb[0].mxu0
      %v341 = vpop.f32.mrb[0].mxu0
      %v342 = vadd.f32 0.0, %v341
      %v343 = vpop.f32.mrb[0].mxu0
      %344 = vdwg.mxu0
      %v353 = vunpack.c.l.b16 %v216
      %v354 = vunpack.c.l.b16 %v217
      %v355 = vunpack.c.l.b16 %v218
      %v356 = vunpack.c.l.b16 %v219
      %v357 = vunpack.c.l.b16 %v220
      %v358 = vunpack.c.l.b16 %v221
      %v359 = vunpack.c.l.b16 %v222
      %v360 = vunpack.c.l.b16 %v223
      %v361 = vpack.c.b16 %v354, %v353
      %v362 = vpack.c.b16 %v356, %v355
      %v363 = vpack.c.b16 %v358, %v357
      %v364 = vpack.c.b16 %v360, %v359
      %v367 = vunpack.c.l.b16 %v224
      %v368 = vunpack.c.l.b16 %v225
      %v369 = vpack.c.b16 %v368, %v367
      %v371 = vsel %vm263, %v361, 0
      %v374 = vsel %vm263, %v362, 0
      %v377 = vsel %vm263, %v363, 0
      %v380 = vsel %vm263, %v364, 0
      %v383 = vsel %vm276, %v369, 0
      %385 = vmatprep.subr.bf16.mxu0 0
      %386 = vmatpush1.bf16.msra.mxu0 %v383
      %387 = vmatprep.subr.bf16.mxu0 0
      %388 = vmatpush1.bf16.msra.mxu0 0
      %389 = vmatprep.subr.bf16.mxu0 0
      %390 = vmatpush1.bf16.msra.mxu0 0
      %391 = vmatprep.subr.bf16.mxu0 0
      %392 = vmatpush1.bf16.msra.mxu0 0
      %393 = vmatprep.subr.bf16.mxu0 0
      %394 = vmatpush1.bf16.msra.mxu0 0
      %395 = vmatprep.subr.bf16.mxu0 0
      %396 = vmatpush1.bf16.msra.mxu0 0
      %397 = vmatprep.subr.bf16.mxu0 0
      %398 = vmatpush1.bf16.msra.mxu0 0
      %399 = vmatprep.subr.bf16.mxu0 0
      %400 = vmatpush1.bf16.msra.mxu0 0
      %401 = vmatprep.subr.bf16.mxu0 0
      %402 = vmatpush1.bf16.msra.mxu0 0
      %403 = vmatprep.subr.bf16.mxu0 0
      %404 = vmatpush1.bf16.msra.mxu0 0
      %405 = vmatprep.subr.bf16.mxu0 0
      %406 = vmatpush1.bf16.msra.mxu0 0
      %407 = vmatprep.subr.bf16.mxu0 0
      %408 = vmatpush1.bf16.msra.mxu0 0
      %409 = vmatprep.subr.bf16.mxu0 0
      %410 = vmatpush1.bf16.msra.mxu0 0
      %411 = vmatprep.subr.bf16.mxu0 0
      %412 = vmatpush1.bf16.msra.mxu0 0
      %413 = vmatprep.subr.bf16.mxu0 0
      %414 = vmatpush1.bf16.msra.mxu0 0
      %415 = vmatprep.subr.bf16.mxu0 0
      %416 = vmatpush1.bf16.msra.mxu0 0
      %417 = vmatprep.mubr.bf16.mxu0 0
      %418 = vmatmul.mubr.bf16.gmra.mrb[0].mxu0 %v371
      %v419 = vpop.f32.mrb[0].mxu0
      %v420 = vadd.f32 %v315, %v419
      %v421 = vpop.f32.mrb[0].mxu0
      %v422 = vpop.f32.mrb[0].mxu0
      %v423 = vadd.f32 %v318, %v422
      %v424 = vpop.f32.mrb[0].mxu0
      %425 = vmatprep.mubr.bf16.mxu0 0
      %426 = vmatmul.mubr.bf16.gmra.mrb[0].mxu0 %v374
      %v427 = vpop.f32.mrb[0].mxu0
      %v428 = vadd.f32 %v323, %v427
      %v429 = vpop.f32.mrb[0].mxu0
      %v430 = vpop.f32.mrb[0].mxu0
      %v431 = vadd.f32 %v326, %v430
      %v432 = vpop.f32.mrb[0].mxu0
      %433 = vmatprep.mubr.bf16.mxu0 0
      %434 = vmatmul.mubr.bf16.gmra.mrb[0].mxu0 %v377
      %v435 = vpop.f32.mrb[0].mxu0
      %v436 = vadd.f32 %v331, %v435
      %v437 = vpop.f32.mrb[0].mxu0
      %v438 = vpop.f32.mrb[0].mxu0
      %v439 = vadd.f32 %v334, %v438
      %v440 = vpop.f32.mrb[0].mxu0
      %441 = vmatprep.mubr.bf16.mxu0 0
      %442 = vmatmul.mubr.bf16.gmra.mrb[0].mxu0 %v380
      %v443 = vpop.f32.mrb[0].mxu0
      %v444 = vadd.f32 %v339, %v443
      %v445 = vpop.f32.mrb[0].mxu0
      %v446 = vpop.f32.mrb[0].mxu0
      %v447 = vadd.f32 %v342, %v446
      %v448 = vpop.f32.mrb[0].mxu0
      %449 = vdwg.mxu0
      %s450 = scalar_lea.vmem %s203, 64
      %v451 = vld [vmem:[%s450] sm:$0xf]
      %v452 = vld [vmem:[%s450 + $0x4] sm:$0xf]
      %v453 = vld [vmem:[%s450 + $0x8] sm:$0xf]
      %v454 = vld [vmem:[%s450 + $0xc] sm:$0xf]
      %v455 = vld [vmem:[%s450 + $0x10] sm:$0xf]
      %v456 = vld [vmem:[%s450 + $0x14] sm:$0xf]
      %v457 = vld [vmem:[%s450 + $0x18] sm:$0xf]
      %v458 = vld [vmem:[%s450 + $0x1c] sm:$0xf]
      %s459 = scalar_lea.vmem %s1, 16
      %v460 = vld [vmem:[%s459] sm:$0xf]
      %v461 = vld [vmem:[%s459 + $0x4] sm:$0x3]
      %v470 = vunpack.c.l.b16 %v451
      %v471 = vunpack.c.l.b16 %v452
      %v472 = vunpack.c.l.b16 %v453
      %v473 = vunpack.c.l.b16 %v454
      %v474 = vunpack.c.l.b16 %v455
      %v475 = vunpack.c.l.b16 %v456
      %v476 = vunpack.c.l.b16 %v457
      %v477 = vunpack.c.l.b16 %v458
      %v478 = vpack.c.b16 %v471, %v470
      %v479 = vpack.c.b16 %v473, %v472
      %v480 = vpack.c.b16 %v475, %v474
      %v481 = vpack.c.b16 %v477, %v476
      %v484 = vunpack.c.l.b16 %v460
      %v485 = vunpack.c.l.b16 %v461
      %v486 = vpack.c.b16 %v485, %v484
      %v488 = vsel %vm263, %v478, 0
      %v491 = vsel %vm263, %v479, 0
      %v494 = vsel %vm263, %v480, 0
      %v497 = vsel %vm263, %v481, 0
      %v500 = vsel %vm276, %v486, 0
      %502 = vmatprep.subr.bf16.mxu0 0
      %503 = vmatpush1.bf16.msra.mxu0 %v500
      %504 = vmatprep.subr.bf16.mxu0 0
      %505 = vmatpush1.bf16.msra.mxu0 0
      %506 = vmatprep.subr.bf16.mxu0 0
      %507 = vmatpush1.bf16.msra.mxu0 0
      %508 = vmatprep.subr.bf16.mxu0 0
      %509 = vmatpush1.bf16.msra.mxu0 0
      %510 = vmatprep.subr.bf16.mxu0 0
      %511 = vmatpush1.bf16.msra.mxu0 0
      %512 = vmatprep.subr.bf16.mxu0 0
      %513 = vmatpush1.bf16.msra.mxu0 0
      %514 = vmatprep.subr.bf16.mxu0 0
      %515 = vmatpush1.bf16.msra.mxu0 0
      %516 = vmatprep.subr.bf16.mxu0 0
      %517 = vmatpush1.bf16.msra.mxu0 0
      %518 = vmatprep.subr.bf16.mxu0 0
      %519 = vmatpush1.bf16.msra.mxu0 0
      %520 = vmatprep.subr.bf16.mxu0 0
      %521 = vmatpush1.bf16.msra.mxu0 0
      %522 = vmatprep.subr.bf16.mxu0 0
      %523 = vmatpush1.bf16.msra.mxu0 0
      %524 = vmatprep.subr.bf16.mxu0 0
      %525 = vmatpush1.bf16.msra.mxu0 0
      %526 = vmatprep.subr.bf16.mxu0 0
      %527 = vmatpush1.bf16.msra.mxu0 0
      %528 = vmatprep.subr.bf16.mxu0 0
      %529 = vmatpush1.bf16.msra.mxu0 0
      %530 = vmatprep.subr.bf16.mxu0 0
      %531 = vmatpush1.bf16.msra.mxu0 0
      %532 = vmatprep.subr.bf16.mxu0 0
      %533 = vmatpush1.bf16.msra.mxu0 0
      %534 = vmatprep.mubr.bf16.mxu0 0
      %535 = vmatmul.mubr.bf16.gmra.mrb[0].mxu0 %v488
      %v536 = vpop.f32.mrb[0].mxu0
      %v537 = vadd.f32 0.0, %v536
      %v538 = vpop.f32.mrb[0].mxu0
      %v539 = vpop.f32.mrb[0].mxu0
      %v540 = vadd.f32 0.0, %v539
      %v541 = vpop.f32.mrb[0].mxu0
      %542 = vmatprep.mubr.bf16.mxu0 0
      %543 = vmatmul.mubr.bf16.gmra.mrb[0].mxu0 %v491
      %v544 = vpop.f32.mrb[0].mxu0
      %v545 = vadd.f32 0.0, %v544
      %v546 = vpop.f32.mrb[0].mxu0
      %v547 = vpop.f32.mrb[0].mxu0
      %v548 = vadd.f32 0.0, %v547
      %v549 = vpop.f32.mrb[0].mxu0
      %550 = vmatprep.mubr.bf16.mxu0 0
      %551 = vmatmul.mubr.bf16.gmra.mrb[0].mxu0 %v494
      %v552 = vpop.f32.mrb[0].mxu0
      %v553 = vadd.f32 0.0, %v552
      %v554 = vpop.f32.mrb[0].mxu0
      %v555 = vpop.f32.mrb[0].mxu0
      %v556 = vadd.f32 0.0, %v555
      %v557 = vpop.f32.mrb[0].mxu0
      %558 = vmatprep.mubr.bf16.mxu0 0
      %559 = vmatmul.mubr.bf16.gmra.mrb[0].mxu0 %v497
      %v560 = vpop.f32.mrb[0].mxu0
      %v561 = vadd.f32 0.0, %v560
      %v562 = vpop.f32.mrb[0].mxu0
      %v563 = vpop.f32.mrb[0].mxu0
      %v564 = vadd.f32 0.0, %v563
      %v565 = vpop.f32.mrb[0].mxu0
      %566 = vdwg.mxu0
      %v567 = vadd.f32 %v420, %v537
      %v568 = vadd.f32 %v423, %v540
      %v569 = vadd.f32 %v428, %v545
      %v570 = vadd.f32 %v431, %v548
      %v571 = vadd.f32 %v436, %v553
      %v572 = vadd.f32 %v439, %v556
      %v573 = vadd.f32 %v444, %v561
      %v574 = vadd.f32 %v447, %v564
      %v575 = vadd.f32 %v567, %v568
      %v576 = vadd.f32 %v575, %v569
      %v577 = vadd.f32 %v576, %v570
      %v578 = vadd.f32 %v577, %v571
      %v579 = vadd.f32 %v578, %v572
      %v580 = vadd.f32 %v579, %v573
      %v581 = vadd.f32 %v580, %v574
      %v582 = vrot.slane %v581, 4
      %v583 = vadd.f32 %v581, %v582
      %v584 = vrot.slane %v583, 2
      %v585 = vadd.f32 %v583, %v584
      %v586 = vrot.slane %v585, 1
      %v587 = vadd.f32 %v585, %v586
      %v588 = vmul.f32 %v587, 0.015625
      %v589 = vsub.f32 %v567, %v588
      %v590 = vsub.f32 %v568, %v588
      %v591 = vsub.f32 %v569, %v588
      %v592 = vsub.f32 %v570, %v588
      %v593 = vsub.f32 %v571, %v588
      %v594 = vsub.f32 %v572, %v588
      %v595 = vsub.f32 %v573, %v588
      %v596 = vsub.f32 %v574, %v588
      %597 = vst [vmem:[%s211] sm:$0x1] %v587
      %v598 = vmul.f32 %v589, %v589
      %v599 = vmul.f32 %v590, %v590
      %v600 = vmul.f32 %v591, %v591
      %v601 = vmul.f32 %v592, %v592
      %v602 = vmul.f32 %v593, %v593
      %v603 = vmul.f32 %v594, %v594
      %v604 = vmul.f32 %v595, %v595
      %v605 = vmul.f32 %v596, %v596
      %v606 = vadd.f32 %v598, %v599
      %v607 = vadd.f32 %v606, %v600
      %v608 = vadd.f32 %v607, %v601
      %v609 = vadd.f32 %v608, %v602
      %v610 = vadd.f32 %v609, %v603
      %v611 = vadd.f32 %v610, %v604
      %v612 = vadd.f32 %v611, %v605
      %v613 = vrot.slane %v612, 4
      %v614 = vadd.f32 %v612, %v613
      %v615 = vrot.slane %v614, 2
      %v616 = vadd.f32 %v614, %v615
      %v617 = vrot.slane %v616, 1
      %v618 = vadd.f32 %v616, %v617
      %619 = vst [vmem:[%s214] sm:$0x1] %v618
      %v620 = vpack.c.bf16 %v568, %v567
      %v621 = vpack.c.bf16 %v570, %v569
      %v622 = vpack.c.bf16 %v572, %v571
      %v623 = vpack.c.bf16 %v574, %v573
      %v628 = vunpack.c.l.b16 %v620
      %v629 = vunpack.c.h.b16 %v620
      %v630 = vunpack.c.l.b16 %v621
      %v631 = vunpack.c.h.b16 %v621
      %v632 = vunpack.c.l.b16 %v622
      %v633 = vunpack.c.h.b16 %v622
      %v634 = vunpack.c.l.b16 %v623
      %v635 = vunpack.c.h.b16 %v623
      %v636 = vpack.c.b16 %v628, %v628
      %v637 = vpack.c.b16 %v629, %v629
      %v638 = vpack.c.b16 %v630, %v630
      %v639 = vpack.c.b16 %v631, %v631
      %v640 = vpack.c.b16 %v632, %v632
      %v641 = vpack.c.b16 %v633, %v633
      %v642 = vpack.c.b16 %v634, %v634
      %v643 = vpack.c.b16 %v635, %v635
      %652 = vst [vmem:[%s208] sm:$0xf] %v636
      %653 = vst [vmem:[%s208 + $0x4] sm:$0xf] %v637
      %654 = vst [vmem:[%s208 + $0x8] sm:$0xf] %v638
      %655 = vst [vmem:[%s208 + $0xc] sm:$0xf] %v639
      %656 = vst [vmem:[%s208 + $0x10] sm:$0xf] %v640
      %657 = vst [vmem:[%s208 + $0x14] sm:$0xf] %v641
      %658 = vst [vmem:[%s208 + $0x18] sm:$0xf] %v642
      %659 = vst [vmem:[%s208 + $0x1c] sm:$0xf] %v643
      %p660 = scmp.lt.s32.totalorder %s16, 1
      %s661 = scalar_select %p660, %s16, 1
      %s662 = smul.addr %s661, 8
      %s663 = smul.addr %s662, 4
      %s664 = scalar_lea.vmem %s2, %s663
      %p665 = scmp.lt.s32.totalorder %s16, 1
      %s666 = scalar_select %p665, %s16, 1
      %s667 = scalar_lea.vmem %s3, %s666
      %p668 = scmp.lt.s32.totalorder %s16, 1
      %s669 = scalar_select %p668, %s16, 1
      %s670 = scalar_lea.vmem %s4, %s669
      // Predicated region
      $region29: #{conv_block.2} parent=27 // pred_check
        %p671 = pneg %p81
      $region30: #{conv_block.2} parent=27 // pred_check_branch
        %673 = sbr.rel (%p671) target = $region32
      $region31: #{conv_block.2} parent=27 // pred_region
        _
      $region32: #{conv_block.2} parent=27 // pred_fallthru
        _
      // Predicated region
      $region33: #{conv_block.2} parent=27 // pred_check
        %p674 = pneg %p107
      $region34: #{conv_block.2} parent=27 // pred_check_branch
        %676 = sbr.rel (%p674) target = $region36
      $region35: #{conv_block.2} parent=27 // pred_region
        _
      $region36: #{conv_block.2} parent=27 // pred_fallthru
        _
      // Predicated region
      $region37: #{conv_block.2} parent=27 // pred_check
        %p677 = pneg %p133
      $region38: #{conv_block.2} parent=27 // pred_check_branch
        %679 = sbr.rel (%p677) target = $region40
      $region39: #{conv_block.2} parent=27 // pred_region
        _
      $region40: #{conv_block.2} parent=27 // pred_fallthru
        _
    $region28: #{conv_block.2} parent=5 // pred_fallthru
      _
    %p680 = scmp.le.s32.totalorder 2, %s11
    // Predicated region
    $region41: #{conv_block.2} parent=5 // pred_check
      %p681 = pneg %p680
    $region42: #{conv_block.2} parent=5 // pred_check_branch
      %683 = sbr.rel (%p681) target = $region44
    $region43: #{conv_block.2} parent=5 // pred_region
      %s684 = ssub.s32 %s11, 2
      // Predicated region
      $region45: #{conv_block.2} parent=43 // pred_check
        %p685 = pneg %p87
      $region46: #{conv_block.2} parent=43 // pred_check_branch
        %687 = sbr.rel (%p685) target = $region48
      $region47: #{conv_block.2} parent=43 // pred_region
        %p688 = scmp.lt.s32.totalorder %s17, 1
        %s689 = scalar_select %p688, %s17, 1
        %s690 = smul.addr %s689, 8
        %s691 = smul.addr %s690, 4
        %s692 = scalar_lea.vmem %s2, %s691
      $region48: #{conv_block.2} parent=43 // pred_fallthru
        _
      // Predicated region
      $region49: #{conv_block.2} parent=43 // pred_check
        %p693 = pneg %p113
      $region50: #{conv_block.2} parent=43 // pred_check_branch
        %695 = sbr.rel (%p693) target = $region52
      $region51: #{conv_block.2} parent=43 // pred_region
        %p696 = scmp.lt.s32.totalorder %s17, 1
        %s697 = scalar_select %p696, %s17, 1
        %s698 = scalar_lea.vmem %s3, %s697
      $region52: #{conv_block.2} parent=43 // pred_fallthru
        _
      // Predicated region
      $region53: #{conv_block.2} parent=43 // pred_check
        %p699 = pneg %p139
      $region54: #{conv_block.2} parent=43 // pred_check_branch
        %701 = sbr.rel (%p699) target = $region56
      $region55: #{conv_block.2} parent=43 // pred_region
        %p702 = scmp.lt.s32.totalorder %s17, 1
        %s703 = scalar_select %p702, %s17, 1
        %s704 = scalar_lea.vmem %s4, %s703
      $region56: #{conv_block.2} parent=43 // pred_fallthru
        _
    $region44: #{conv_block.2} parent=5 // pred_fallthru
      _
  $region6: #{conv_block.2} parent=0 // loop_footer
    %s15 = sadd.s32 1, %s11
  $region7: #{conv_block.2} parent=0 // loop_footer_branch
    %10 = sbr.rel target = $region3
  $region8: #{conv_block.2} parent=0 // loop_exit
    _

</llo_original>
